<compile_context>
chip_gen: v5e
topology: v5e:2x2
jax: 0.10.0
libtpu: 0.0.40
codegen_flags: <defaults>
</compile_context>

<pallas_src>
import functools

import jax
import jax.numpy as jnp
from jax import lax
from jax.experimental import pallas as pl
from jax.experimental.pallas import tpu as pltpu

_LANES = 128


def _dice_partial_kernel(pred_ref, lab_ref, inter_ref, psum_ref, ysum_ref,
                         acc_i, acc_p, acc_y, *,
                         num_classes, use_softmax, tile_rows, valid_pixels,
                         needs_mask):
    j = pl.program_id(1)

    @pl.when(j == 0)
    def _():
        acc_i[...] = jnp.zeros_like(acc_i)
        acc_p[...] = jnp.zeros_like(acc_p)
        acc_y[...] = jnp.zeros_like(acc_y)

    pred = pred_ref[...]                 # (1, C, TS, 128), input dtype
    lab = lab_ref[...][0, 0]             # (TS, 128) int32

    # Per-channel (TS, 128) slabs, promoted to f32 for the math.
    chans = [pred[0, c].astype(jnp.float32) for c in range(num_classes)]

    if use_softmax:
        m = chans[0]
        for c in range(1, num_classes):
            m = jnp.maximum(m, chans[c])
        es = [jnp.exp(x - m) for x in chans]
        denom = es[0]
        for c in range(1, num_classes):
            denom = denom + es[c]
        inv = pl.reciprocal(denom, approx=False)      # EUP, avoids f32 divide
        probs_fg = [es[c] * inv for c in range(1, num_classes)]
    else:
        probs_fg = chans[1:]

    # Foreground prob sum, intersection with (implicit) one-hot, one-hot sum.
    p_sum = probs_fg[0]
    inter = jnp.where(lab == 1, probs_fg[0], 0.0)
    for c in range(2, num_classes):
        p_sum = p_sum + probs_fg[c - 1]
        inter = inter + jnp.where(lab == c, probs_fg[c - 1], 0.0)
    y_fg = (lab != 0).astype(jnp.float32)

    if needs_mask:
        # Mask out pixels that only exist because of spatial padding.
        row = lax.broadcasted_iota(jnp.int32, (tile_rows, _LANES), 0)
        lane = lax.broadcasted_iota(jnp.int32, (tile_rows, _LANES), 1)
        gidx = (j * tile_rows + row) * _LANES + lane
        valid = (gidx < valid_pixels).astype(jnp.float32)
        p_sum = p_sum * valid
        inter = inter * valid
        y_fg = y_fg * valid

    # Pure elementwise VPU accumulation (hides under DMA).
    acc_i[...] += inter
    acc_p[...] += p_sum
    acc_y[...] += y_fg

    # Single cross-lane/sublane reduce per batch element.
    @pl.when(j == pl.num_programs(1) - 1)
    def _():
        inter_ref[...] = jnp.full((1, 1, 1), jnp.sum(acc_i[...]), jnp.float32)
        psum_ref[...] = jnp.full((1, 1, 1), jnp.sum(acc_p[...]), jnp.float32)
        ysum_ref[...] = jnp.full((1, 1, 1), jnp.sum(acc_y[...]), jnp.float32)


def multiclass_dice_loss(y_true, y_pred, *, num_classes, softmax_dim=None,
                         smooth=1e-6):
    """Pallas equivalent of MulticlassDiceLoss(num_classes, softmax_dim).forward."""
    N, C, H, W = y_pred.shape
    assert C == num_classes and num_classes >= 2
    # softmax_dim, when provided, must be the channel axis for this layout.
    assert softmax_dim in (None, 1)

    HW = H * W
    dtype_bytes = jnp.dtype(y_pred.dtype).itemsize

    # ---- spatial tiling -----------------------------------------------------
    S = -(-HW // _LANES)                       # rows of 128 lanes
    # Keep a single (double-buffered) pred block well under VMEM budget even
    # on v7x (64 MiB physical): <= ~4 MiB per pred buffer.
    ts = max(8, (4 * 1024 * 1024) // (C * _LANES * dtype_bytes))
    ts = (ts // 8) * 8
    TS = min(256, ts)                          # 256*128 = 32K pixels/tile sweet spot
    if S < TS:
        TS = -(-S // 8) * 8                    # small image: one full-extent tile
    S_pad = -(-S // TS) * TS
    HW_pad = S_pad * _LANES
    n_tiles = S_pad // TS
    needs_mask = (HW_pad != HW)

    # ---- layout: channel-leading, (rows, 128) minor -------------------------
    pred = y_pred.reshape(N, C, HW)            # keep input dtype (bf16 halves traffic)
    lab = y_true.reshape(N, 1, HW).astype(jnp.int32)
    if needs_mask:
        pad = HW_pad - HW
        pred = jnp.pad(pred, ((0, 0), (0, 0), (0, pad)))
        lab = jnp.pad(lab, ((0, 0), (0, 0), (0, pad)))
    pred = pred.reshape(N, C, S_pad, _LANES)
    lab = lab.reshape(N, 1, S_pad, _LANES)

    use_softmax = softmax_dim is not None
    kernel = functools.partial(
        _dice_partial_kernel,
        num_classes=C,
        use_softmax=use_softmax,
        tile_rows=TS,
        valid_pixels=HW,
        needs_mask=needs_mask,
    )

    out_shape3 = jax.ShapeDtypeStruct((N, 1, 1), jnp.float32)
    out_spec3 = pl.BlockSpec((1, 1, 1), lambda b, j: (b, 0, 0))

    cost = pl.CostEstimate(
        flops=int(N * HW_pad * C * 8),
        transcendentals=int(N * HW_pad * C) if use_softmax else 0,
        bytes_accessed=int(N * HW_pad * (C * dtype_bytes + 4) + N * 12),
    )

    inter, psum, ysum = pl.pallas_call(
        kernel,
        out_shape=(out_shape3, out_shape3, out_shape3),
        grid_spec=pltpu.PrefetchScalarGridSpec(
            num_scalar_prefetch=0,
            grid=(N, n_tiles),
            in_specs=[
                pl.BlockSpec((1, C, TS, _LANES), lambda b, j: (b, 0, j, 0)),
                pl.BlockSpec((1, 1, TS, _LANES), lambda b, j: (b, 0, j, 0)),
            ],
            out_specs=[out_spec3, out_spec3, out_spec3],
            scratch_shapes=[pltpu.VMEM((TS, _LANES), jnp.float32)] * 3,
        ),
        compiler_params=pltpu.CompilerParams(
            dimension_semantics=("parallel", "arbitrary"),
            vmem_limit_bytes=32 * 1024 * 1024,
        ),
        cost_estimate=cost,
    )(pred, lab)

    # Tiny final combine (N partial sums each) in plain JAX.
    inter_s = jnp.sum(inter)
    psum_s = jnp.sum(psum)
    ysum_s = jnp.sum(ysum)
    dice = 2.0 * inter_s / (psum_s + ysum_s + smooth)
    return -dice


def _reference_loss(y_true, y_pred, *, num_classes, softmax_dim=None,
                    smooth=1e-6):
    """Pure-JAX mirror of the PyTorch forward (for a silent correctness check)."""
    probs = y_pred
    if softmax_dim is not None:
        probs = jax.nn.softmax(y_pred, axis=softmax_dim)
    oh = jax.nn.one_hot(y_true, num_classes)           # (N, H, W, C)
    oh = jnp.transpose(oh, (0, 3, 1, 2))               # (N, C, H, W)
    p = probs[:, 1:, :, :]
    y = oh[:, 1:, :, :]
    inter = jnp.sum(y * p)
    dice = 2.0 * inter / (jnp.sum(p) + jnp.sum(y) + smooth)
    return -dice


if __name__ == "__main__":
    key = jax.random.PRNGKey(0)
    k1, k2, k3, k4 = jax.random.split(key, 4)

    N, C, H, W = 2, 4, 16, 16
    y_pred = jax.random.normal(k1, (N, C, H, W), dtype=jnp.float32)
    y_true = jax.random.randint(k2, (N, H, W), minval=0, maxval=C,
                                dtype=jnp.int32)

    # Softmax path (softmax_dim=1, the channel axis).
    loss = multiclass_dice_loss(y_true, y_pred, num_classes=C, softmax_dim=1)
    loss = jax.block_until_ready(loss)
    ref = _reference_loss(y_true, y_pred, num_classes=C, softmax_dim=1)
    assert jnp.allclose(loss, ref, rtol=1e-5, atol=1e-6), (loss, ref)

    # No-softmax path (logits taken as probabilities).
    loss2 = multiclass_dice_loss(y_true, y_pred, num_classes=C,
                                 softmax_dim=None)
    loss2 = jax.block_until_ready(loss2)
    ref2 = _reference_loss(y_true, y_pred, num_classes=C, softmax_dim=None)
    assert jnp.allclose(loss2, ref2, rtol=1e-5, atol=1e-6), (loss2, ref2)

    # Non-128-divisible spatial size exercises the padded-tail mask.
    N2, C2, H2, W2 = 1, 3, 10, 10
    y_pred3 = jax.random.normal(k3, (N2, C2, H2, W2), dtype=jnp.float32)
    y_true3 = jax.random.randint(k4, (N2, H2, W2), minval=0, maxval=C2,
                                 dtype=jnp.int32)
    loss3 = multiclass_dice_loss(y_true3, y_pred3, num_classes=C2,
                                 softmax_dim=1)
    loss3 = jax.block_until_ready(loss3)
    ref3 = _reference_loss(y_true3, y_pred3, num_classes=C2, softmax_dim=1)
    assert jnp.allclose(loss3, ref3, rtol=1e-5, atol=1e-6), (loss3, ref3)

    print("KERNEL_OK")
</pallas_src>

<mosaic_0001>
module attributes {stable_mosaic.version = 11 : i64} {
  func.func @_dice_partial_kernel(%arg0: i32, %arg1: i32, %arg2: memref<1x4x8x128xf32, #tpu.memory_space<vmem>>, %arg3: memref<1x1x8x128xi32, #tpu.memory_space<vmem>>, %arg4: memref<1x1x1xf32, #tpu.memory_space<vmem>>, %arg5: memref<1x1x1xf32, #tpu.memory_space<vmem>>, %arg6: memref<1x1x1xf32, #tpu.memory_space<vmem>>, %arg7: memref<8x128xf32, #tpu.memory_space<vmem>>, %arg8: memref<8x128xf32, #tpu.memory_space<vmem>>, %arg9: memref<8x128xf32, #tpu.memory_space<vmem>>) attributes {dimension_semantics = [#tpu.dimension_semantics<parallel>, #tpu.dimension_semantics<arbitrary>], iteration_bounds = array<i64: 2, 1>, scalar_prefetch = 0 : i64, scratch_operands = 3 : i64, tpu.core_type = #tpu.core_type<tc>, window_params = [{transform_indices = @transform_0, window_bounds = array<i64: 1, 4, 8, 128>}, {transform_indices = @transform_1, window_bounds = array<i64: 1, 1, 8, 128>}, {transform_indices = @transform_2, window_bounds = array<i64: 1, 1, 1>}, {transform_indices = @transform_3, window_bounds = array<i64: 1, 1, 1>}, {transform_indices = @transform_4, window_bounds = array<i64: 1, 1, 1>}]} {
    %c0_i32 = arith.constant 0 : i32
    %0 = arith.cmpi eq, %arg1, %c0_i32 : i32
    %1 = arith.extui %0 : i1 to i32
    %c0_i32_0 = arith.constant 0 : i32
    %2 = arith.cmpi ne, %1, %c0_i32_0 : i32
    scf.if %2 {
      %cst_25 = arith.constant 0.000000e+00 : f32
      %79 = vector.broadcast %cst_25 : f32 to vector<8x128xf32>
      %c0_26 = arith.constant 0 : index
      %c0_27 = arith.constant 0 : index
      %80 = vector.load %arg7[%c0_26, %c0_27] : memref<8x128xf32, #tpu.memory_space<vmem>>, vector<8x128xf32>
      tpu.vector_store %arg7[%c0_26, %c0_27], %79 {strides = array<i32>} : memref<8x128xf32, #tpu.memory_space<vmem>>, vector<8x128xf32>,
      %cst_28 = arith.constant 0.000000e+00 : f32
      %81 = vector.broadcast %cst_28 : f32 to vector<8x128xf32>
      %c0_29 = arith.constant 0 : index
      %c0_30 = arith.constant 0 : index
      %82 = vector.load %arg8[%c0_29, %c0_30] : memref<8x128xf32, #tpu.memory_space<vmem>>, vector<8x128xf32>
      tpu.vector_store %arg8[%c0_29, %c0_30], %81 {strides = array<i32>} : memref<8x128xf32, #tpu.memory_space<vmem>>, vector<8x128xf32>,
      %cst_31 = arith.constant 0.000000e+00 : f32
      %83 = vector.broadcast %cst_31 : f32 to vector<8x128xf32>
      %c0_32 = arith.constant 0 : index
      %c0_33 = arith.constant 0 : index
      %84 = vector.load %arg9[%c0_32, %c0_33] : memref<8x128xf32, #tpu.memory_space<vmem>>, vector<8x128xf32>
      tpu.vector_store %arg9[%c0_32, %c0_33], %83 {strides = array<i32>} : memref<8x128xf32, #tpu.memory_space<vmem>>, vector<8x128xf32>,
    } else {
    }
    %c0 = arith.constant 0 : index
    %c0_1 = arith.constant 0 : index
    %c0_2 = arith.constant 0 : index
    %c0_3 = arith.constant 0 : index
    %3 = vector.load %arg2[%c0, %c0_1, %c0_2, %c0_3] : memref<1x4x8x128xf32, #tpu.memory_space<vmem>>, vector<1x4x8x128xf32>
    %c0_4 = arith.constant 0 : index
    %c0_5 = arith.constant 0 : index
    %c0_6 = arith.constant 0 : index
    %c0_7 = arith.constant 0 : index
    %4 = vector.load %arg3[%c0_4, %c0_5, %c0_6, %c0_7] : memref<1x1x8x128xi32, #tpu.memory_space<vmem>>, vector<1x1x8x128xi32>
    %5 = vector.shape_cast %4 : vector<1x1x8x128xi32> to vector<8x128xi32>
    %6 = vector.extract_strided_slice %3 {offsets = [0, 0, 0, 0], sizes = [1, 1, 8, 128], strides = [1, 1, 1, 1]} : vector<1x4x8x128xf32> to vector<1x1x8x128xf32>
    %7 = vector.shape_cast %6 : vector<1x1x8x128xf32> to vector<8x128xf32>
    %8 = vector.extract_strided_slice %3 {offsets = [0, 1, 0, 0], sizes = [1, 1, 8, 128], strides = [1, 1, 1, 1]} : vector<1x4x8x128xf32> to vector<1x1x8x128xf32>
    %9 = vector.shape_cast %8 : vector<1x1x8x128xf32> to vector<8x128xf32>
    %10 = vector.extract_strided_slice %3 {offsets = [0, 2, 0, 0], sizes = [1, 1, 8, 128], strides = [1, 1, 1, 1]} : vector<1x4x8x128xf32> to vector<1x1x8x128xf32>
    %11 = vector.shape_cast %10 : vector<1x1x8x128xf32> to vector<8x128xf32>
    %12 = vector.extract_strided_slice %3 {offsets = [0, 3, 0, 0], sizes = [1, 1, 8, 128], strides = [1, 1, 1, 1]} : vector<1x4x8x128xf32> to vector<1x1x8x128xf32>
    %13 = vector.shape_cast %12 : vector<1x1x8x128xf32> to vector<8x128xf32>
    %14 = arith.maximumf %7, %9 : vector<8x128xf32>
    %15 = arith.maximumf %14, %11 : vector<8x128xf32>
    %16 = arith.maximumf %15, %13 : vector<8x128xf32>
    %17 = arith.subf %7, %16 : vector<8x128xf32>
    %18 = math.exp %17 : vector<8x128xf32>
    %19 = arith.subf %9, %16 : vector<8x128xf32>
    %20 = math.exp %19 : vector<8x128xf32>
    %21 = arith.subf %11, %16 : vector<8x128xf32>
    %22 = math.exp %21 : vector<8x128xf32>
    %23 = arith.subf %13, %16 : vector<8x128xf32>
    %24 = math.exp %23 : vector<8x128xf32>
    %25 = arith.addf %18, %20 : vector<8x128xf32>
    %26 = arith.addf %25, %22 : vector<8x128xf32>
    %27 = arith.addf %26, %24 : vector<8x128xf32>
    %28 = tpu.reciprocal %27 : vector<8x128xf32> -> vector<8x128xf32>
    %29 = arith.mulf %20, %28 : vector<8x128xf32>
    %30 = arith.mulf %22, %28 : vector<8x128xf32>
    %31 = arith.mulf %24, %28 : vector<8x128xf32>
    %c1_i32 = arith.constant 1 : i32
    %32 = vector.broadcast %c1_i32 : i32 to vector<8x128xi32>
    %33 = arith.cmpi eq, %5, %32 : vector<8x128xi32>
    %cst = arith.constant 0.000000e+00 : f32
    %34 = vector.broadcast %cst : f32 to vector<8x128xf32>
    %35 = arith.select %33, %29, %34 : vector<8x128xi1>, vector<8x128xf32>
    %36 = arith.addf %29, %30 : vector<8x128xf32>
    %c2_i32 = arith.constant 2 : i32
    %37 = vector.broadcast %c2_i32 : i32 to vector<8x128xi32>
    %38 = arith.cmpi eq, %5, %37 : vector<8x128xi32>
    %cst_8 = arith.constant 0.000000e+00 : f32
    %39 = vector.broadcast %cst_8 : f32 to vector<8x128xf32>
    %40 = arith.select %38, %30, %39 : vector<8x128xi1>, vector<8x128xf32>
    %41 = arith.addf %35, %40 : vector<8x128xf32>
    %42 = arith.addf %36, %31 : vector<8x128xf32>
    %c3_i32 = arith.constant 3 : i32
    %43 = vector.broadcast %c3_i32 : i32 to vector<8x128xi32>
    %44 = arith.cmpi eq, %5, %43 : vector<8x128xi32>
    %cst_9 = arith.constant 0.000000e+00 : f32
    %45 = vector.broadcast %cst_9 : f32 to vector<8x128xf32>
    %46 = arith.select %44, %31, %45 : vector<8x128xi1>, vector<8x128xf32>
    %47 = arith.addf %41, %46 : vector<8x128xf32>
    %c0_i32_10 = arith.constant 0 : i32
    %48 = vector.broadcast %c0_i32_10 : i32 to vector<8x128xi32>
    %49 = arith.cmpi ne, %5, %48 : vector<8x128xi32>
    %50 = arith.extui %49 : vector<8x128xi1> to vector<8x128xi32>
    %51 = arith.sitofp %50 : vector<8x128xi32> to vector<8x128xf32>
    %52 = tpu.iota {dimensions = array<i32: 0>} : vector<8x128xi32>
    %53 = tpu.iota {dimensions = array<i32: 1>} : vector<8x128xi32>
    %c8_i32 = arith.constant 8 : i32
    %54 = arith.muli %arg1, %c8_i32 : i32
    %55 = vector.broadcast %54 : i32 to vector<8x128xi32>
    %56 = arith.addi %55, %52 : vector<8x128xi32>
    %c128_i32 = arith.constant 128 : i32
    %57 = vector.broadcast %c128_i32 : i32 to vector<8x128xi32>
    %58 = arith.muli %56, %57 : vector<8x128xi32>
    %59 = arith.addi %58, %53 : vector<8x128xi32>
    %c256_i32 = arith.constant 256 : i32
    %60 = vector.broadcast %c256_i32 : i32 to vector<8x128xi32>
    %61 = arith.cmpi slt, %59, %60 : vector<8x128xi32>
    %62 = arith.extui %61 : vector<8x128xi1> to vector<8x128xi32>
    %63 = arith.sitofp %62 : vector<8x128xi32> to vector<8x128xf32>
    %64 = arith.mulf %42, %63 : vector<8x128xf32>
    %65 = arith.mulf %47, %63 : vector<8x128xf32>
    %66 = arith.mulf %51, %63 : vector<8x128xf32>
    %c0_11 = arith.constant 0 : index
    %c0_12 = arith.constant 0 : index
    %67 = vector.load %arg7[%c0_11, %c0_12] : memref<8x128xf32, #tpu.memory_space<vmem>>, vector<8x128xf32>
    %68 = arith.addf %67, %65 : vector<8x128xf32>
    %c0_13 = arith.constant 0 : index
    %c0_14 = arith.constant 0 : index
    %69 = vector.load %arg7[%c0_13, %c0_14] : memref<8x128xf32, #tpu.memory_space<vmem>>, vector<8x128xf32>
    tpu.vector_store %arg7[%c0_13, %c0_14], %68 {strides = array<i32>} : memref<8x128xf32, #tpu.memory_space<vmem>>, vector<8x128xf32>,
    %c0_15 = arith.constant 0 : index
    %c0_16 = arith.constant 0 : index
    %70 = vector.load %arg8[%c0_15, %c0_16] : memref<8x128xf32, #tpu.memory_space<vmem>>, vector<8x128xf32>
    %71 = arith.addf %70, %64 : vector<8x128xf32>
    %c0_17 = arith.constant 0 : index
    %c0_18 = arith.constant 0 : index
    %72 = vector.load %arg8[%c0_17, %c0_18] : memref<8x128xf32, #tpu.memory_space<vmem>>, vector<8x128xf32>
    tpu.vector_store %arg8[%c0_17, %c0_18], %71 {strides = array<i32>} : memref<8x128xf32, #tpu.memory_space<vmem>>, vector<8x128xf32>,
    %c0_19 = arith.constant 0 : index
    %c0_20 = arith.constant 0 : index
    %73 = vector.load %arg9[%c0_19, %c0_20] : memref<8x128xf32, #tpu.memory_space<vmem>>, vector<8x128xf32>
    %74 = arith.addf %73, %66 : vector<8x128xf32>
    %c0_21 = arith.constant 0 : index
    %c0_22 = arith.constant 0 : index
    %75 = vector.load %arg9[%c0_21, %c0_22] : memref<8x128xf32, #tpu.memory_space<vmem>>, vector<8x128xf32>
    tpu.vector_store %arg9[%c0_21, %c0_22], %74 {strides = array<i32>} : memref<8x128xf32, #tpu.memory_space<vmem>>, vector<8x128xf32>,
    %c0_i32_23 = arith.constant 0 : i32
    %76 = arith.cmpi eq, %arg1, %c0_i32_23 : i32
    %77 = arith.extui %76 : i1 to i32
    %c0_i32_24 = arith.constant 0 : i32
    %78 = arith.cmpi ne, %77, %c0_i32_24 : i32
    scf.if %78 {
      %c0_25 = arith.constant 0 : index
      %c0_26 = arith.constant 0 : index
      %79 = vector.load %arg7[%c0_25, %c0_26] : memref<8x128xf32, #tpu.memory_space<vmem>>, vector<8x128xf32>
      %80 = vector.shape_cast %79 : vector<8x128xf32> to vector<1x8x128xf32>
      %cst_27 = arith.constant dense<0.000000e+00> : vector<1xf32>
      %81 = vector.multi_reduction <add>, %80, %cst_27 [1, 2] : vector<1x8x128xf32> to vector<1xf32>
      %82 = vector.shape_cast %81 : vector<1xf32> to vector<1x1x1xf32>
      %83 = vector.extract %82[0, 0, 0] : f32 from vector<1x1x1xf32>
      %84 = vector.broadcast %83 : f32 to vector<1x1x1xf32>
      %c0_28 = arith.constant 0 : index
      %c0_29 = arith.constant 0 : index
      %c0_30 = arith.constant 0 : index
      %85 = vector.load %arg4[%c0_28, %c0_29, %c0_30] : memref<1x1x1xf32, #tpu.memory_space<vmem>>, vector<1x1x1xf32>
      tpu.vector_store %arg4[%c0_28, %c0_29, %c0_30], %84 {strides = array<i32>} : memref<1x1x1xf32, #tpu.memory_space<vmem>>, vector<1x1x1xf32>,
      %c0_31 = arith.constant 0 : index
      %c0_32 = arith.constant 0 : index
      %86 = vector.load %arg8[%c0_31, %c0_32] : memref<8x128xf32, #tpu.memory_space<vmem>>, vector<8x128xf32>
      %87 = vector.shape_cast %86 : vector<8x128xf32> to vector<1x8x128xf32>
      %cst_33 = arith.constant dense<0.000000e+00> : vector<1xf32>
      %88 = vector.multi_reduction <add>, %87, %cst_33 [1, 2] : vector<1x8x128xf32> to vector<1xf32>
      %89 = vector.shape_cast %88 : vector<1xf32> to vector<1x1x1xf32>
      %90 = vector.extract %89[0, 0, 0] : f32 from vector<1x1x1xf32>
      %91 = vector.broadcast %90 : f32 to vector<1x1x1xf32>
      %c0_34 = arith.constant 0 : index
      %c0_35 = arith.constant 0 : index
      %c0_36 = arith.constant 0 : index
      %92 = vector.load %arg5[%c0_34, %c0_35, %c0_36] : memref<1x1x1xf32, #tpu.memory_space<vmem>>, vector<1x1x1xf32>
      tpu.vector_store %arg5[%c0_34, %c0_35, %c0_36], %91 {strides = array<i32>} : memref<1x1x1xf32, #tpu.memory_space<vmem>>, vector<1x1x1xf32>,
      %c0_37 = arith.constant 0 : index
      %c0_38 = arith.constant 0 : index
      %93 = vector.load %arg9[%c0_37, %c0_38] : memref<8x128xf32, #tpu.memory_space<vmem>>, vector<8x128xf32>
      %94 = vector.shape_cast %93 : vector<8x128xf32> to vector<1x8x128xf32>
      %cst_39 = arith.constant dense<0.000000e+00> : vector<1xf32>
      %95 = vector.multi_reduction <add>, %94, %cst_39 [1, 2] : vector<1x8x128xf32> to vector<1xf32>
      %96 = vector.shape_cast %95 : vector<1xf32> to vector<1x1x1xf32>
      %97 = vector.extract %96[0, 0, 0] : f32 from vector<1x1x1xf32>
      %98 = vector.broadcast %97 : f32 to vector<1x1x1xf32>
      %c0_40 = arith.constant 0 : index
      %c0_41 = arith.constant 0 : index
      %c0_42 = arith.constant 0 : index
      %99 = vector.load %arg6[%c0_40, %c0_41, %c0_42] : memref<1x1x1xf32, #tpu.memory_space<vmem>>, vector<1x1x1xf32>
      tpu.vector_store %arg6[%c0_40, %c0_41, %c0_42], %98 {strides = array<i32>} : memref<1x1x1xf32, #tpu.memory_space<vmem>>, vector<1x1x1xf32>,
    } else {
    }
    return
  }
  func.func @transform_0(%arg0: i32, %arg1: i32) -> (i32, i32, i32, i32) {
    %c0_i32 = arith.constant 0 : i32
    %c0_i32_0 = arith.constant 0 : i32
    %c0_i32_1 = arith.constant 0 : i32
    return %arg0, %c0_i32, %arg1, %c0_i32_0 : i32, i32, i32, i32
  }
  func.func @transform_1(%arg0: i32, %arg1: i32) -> (i32, i32, i32, i32) {
    %c0_i32 = arith.constant 0 : i32
    %c0_i32_0 = arith.constant 0 : i32
    %c0_i32_1 = arith.constant 0 : i32
    return %arg0, %c0_i32, %arg1, %c0_i32_0 : i32, i32, i32, i32
  }
  func.func @transform_2(%arg0: i32, %arg1: i32) -> (i32, i32, i32) {
    %c0_i32 = arith.constant 0 : i32
    %c0_i32_0 = arith.constant 0 : i32
    %c0_i32_1 = arith.constant 0 : i32
    return %arg0, %c0_i32, %c0_i32_0 : i32, i32, i32
  }
  func.func @transform_3(%arg0: i32, %arg1: i32) -> (i32, i32, i32) {
    %c0_i32 = arith.constant 0 : i32
    %c0_i32_0 = arith.constant 0 : i32
    %c0_i32_1 = arith.constant 0 : i32
    return %arg0, %c0_i32, %c0_i32_0 : i32, i32, i32
  }
  func.func @transform_4(%arg0: i32, %arg1: i32) -> (i32, i32, i32) {
    %c0_i32 = arith.constant 0 : i32
    %c0_i32_0 = arith.constant 0 : i32
    %c0_i32_1 = arith.constant 0 : i32
    return %arg0, %c0_i32, %c0_i32_0 : i32, i32, i32
  }
}

</mosaic_0001>

<llo_original>
// kernel: tpu_custom_call.1
$region0: #{tpu_custom_call.1}
  #allocation0 [shape = 'u32[]', space=smem, size = 0x4, offset = 0x4, fixed_abs, tag = 'smem constant byte address 0x4 - core index']
  #allocation1 [shape = 'u32[72,128]{1,0:T(1,128)}', space=vmem, size = 0x9000, scoped, tag = 'internal scratch']
  #allocation2 [shape = 'f32[8,128]{1,0:T(8,128)}', space=vmem, size = 0x1000, scoped, tag = 'scratch operand']
  #allocation3 [shape = 'f32[8,128]{1,0:T(8,128)}', space=vmem, size = 0x1000, scoped, tag = 'scratch operand']
  #allocation4 [shape = 'f32[8,128]{1,0:T(8,128)}', space=vmem, size = 0x1000, scoped, tag = 'scratch operand']
  %s0 = inlined_call_operand.hbm [shape: f32[2,4,8,128], index: 0, kind: input, shape index: {}]
  %s1 = inlined_call_operand.hbm [shape: s32[2,1,8,128], index: 1, kind: input, shape index: {}]
  %s2 = inlined_call_operand.vmem [shape: f32[2,1,1], index: 2, kind: output, shape index: {0}]
  %s3 = inlined_call_operand.vmem [shape: f32[2,1,1], index: 3, kind: output, shape index: {1}]
  %s4 = inlined_call_operand.vmem [shape: f32[2,1,1], index: 4, kind: output, shape index: {2}]
  %5 = xla_tuple %s2, %s3, %s4
  %s6 = sld [smem:[#allocation0]]
  $region73: #{tpu_custom_call.1} parent=0
    _
  %s8 = ssub.s32 1, %s6
  %s9 = scalar_select 0, %s8, %s6
  $region1: #{tpu_custom_call.1} parent=0
    #allocation5 [shape = 'u8[32768]{0}', space=vmem, size = 0x8000, scoped, tag = 'input window, operand 0']
    #allocation6 [shape = 's32[2]{0}', space=sflag, size = 0x8, scoped, tag = 'scoped memory for tpu_custom_call.1']
    #allocation7 [shape = 'u8[8192]{0}', space=vmem, size = 0x2000, scoped, tag = 'input window, operand 1']
    #allocation8 [shape = 's32[2]{0}', space=sflag, size = 0x8, scoped, tag = 'scoped memory for tpu_custom_call.1']
    %10 = vsyncpa [#allocation6], 0
    %s11 = scalar_lea.sflag [#allocation6], 1
    %12 = vsyncpa %s11, 0
    %13 = vsyncpa [#allocation8], 0
    %s14 = scalar_lea.sflag [#allocation8], 1
    %15 = vsyncpa %s14, 0
    loop: start=0, step=1, limit=4
    $region2: #{tpu_custom_call.1} parent=1 // loop_pre_header
      _
    $region3: #{tpu_custom_call.1} parent=1 // loop_header
      %s17 = sphi 0, %s21
      %p18 = scmp.ge.s32.totalorder %s17, 4
      %s24 = sphi 0, %s36
      %s25 = sphi 0, %s32
      %s26 = sphi 0, %s24
      %s27 = sphi 0, %s25
      %s28 = sphi 0, %s26
      %s29 = sphi 0, %s27
      %s41 = sphi 0, %s43
      %s44 = sphi 0, %s41
      %s45 = sphi 0, %s44
      %s61 = sphi 0, %s45
      %s69 = sphi 0, %s71
      %s72 = sphi 0, %s69
      %s73 = sphi 0, %s72
      %s89 = sphi 0, %s73
      %s95 = sphi 0, %s97
      %s98 = sphi 0, %s95
      %s99 = sphi 0, %s98
      %s115 = sphi 0, %s99
      %s121 = sphi 0, %s123
      %s124 = sphi 0, %s121
      %s125 = sphi 0, %s124
      %s141 = sphi 0, %s125
      %s147 = sphi 0, %s149
      %s150 = sphi 0, %s147
      %s151 = sphi 0, %s150
      %s167 = sphi 0, %s151
    $region4: #{tpu_custom_call.1} parent=1 // loop_header_branch
      %20 = sbr.rel (%p18) target = $region8
    $region5: #{tpu_custom_call.1} parent=1 // loop_body
      %s22 = ssub.s32 %s17, 1
      %s23 = ssub.s32 %s17, 2
      %s30 = sadd.s32 1, %s25
      %p31 = scmp.ge.s32.totalorder %s30, 1
      %s32 = scalar_select %p31, 0, %s30
      %s33 = sadd.s32 1, %s24
      %s34 = scalar_select %p31, %s33, %s24
      %p35 = scmp.ge.s32.totalorder %s34, 2
      %s36 = scalar_select %p35, 0, %s34
      %s37 = ssub.s32 %s24, %s36
      %s38 = ssub.s32 %s25, %s32
      %s39 = sor.u32 %s37, %s38
      %p40 = scmp.eq.s32.totalorder %s39, 0
      %s42 = sadd.s32 %s41, 1
      %s43 = scalar_select %p40, %s41, %s42
      %p46 = pneg %p40
      %p47 = scmp.eq.s32.totalorder %s17, 1
      %p48 = por %p46, %p47
      %p49 = scmp.ne.s32.totalorder %s41, %s44
      %p50 = scmp.eq.s32.totalorder %s17, 0
      %p51 = por %p49, %p50
      %p52 = scmp.ne.s32.totalorder %s41, %s44
      %p53 = scmp.eq.s32.totalorder %s22, 1
      %p54 = por %p52, %p53
      %p55 = scmp.ne.s32.totalorder %s44, %s45
      %p56 = scmp.eq.s32.totalorder %s22, 0
      %p57 = por %p55, %p56
      %p58 = scmp.ne.s32.totalorder %s44, %s45
      %p59 = scmp.eq.s32.totalorder %s23, 1
      %p60 = por %p58, %p59
      %p62 = scmp.ne.s32.totalorder %s45, %s61
      %p63 = scmp.eq.s32.totalorder %s23, 0
      %p64 = por %p62, %p63
      %s65 = ssub.s32 %s24, %s36
      %s66 = ssub.s32 %s25, %s32
      %s67 = sor.u32 %s65, %s66
      %p68 = scmp.eq.s32.totalorder %s67, 0
      %s70 = sadd.s32 %s69, 1
      %s71 = scalar_select %p68, %s69, %s70
      %p74 = pneg %p68
      %p75 = scmp.eq.s32.totalorder %s17, 1
      %p76 = por %p74, %p75
      %p77 = scmp.ne.s32.totalorder %s69, %s72
      %p78 = scmp.eq.s32.totalorder %s17, 0
      %p79 = por %p77, %p78
      %p80 = scmp.ne.s32.totalorder %s69, %s72
      %p81 = scmp.eq.s32.totalorder %s22, 1
      %p82 = por %p80, %p81
      %p83 = scmp.ne.s32.totalorder %s72, %s73
      %p84 = scmp.eq.s32.totalorder %s22, 0
      %p85 = por %p83, %p84
      %p86 = scmp.ne.s32.totalorder %s72, %s73
      %p87 = scmp.eq.s32.totalorder %s23, 1
      %p88 = por %p86, %p87
      %p90 = scmp.ne.s32.totalorder %s73, %s89
      %p91 = scmp.eq.s32.totalorder %s23, 0
      %p92 = por %p90, %p91
      %s93 = ssub.s32 %s24, %s36
      %p94 = scmp.eq.s32.totalorder %s93, 0
      %s96 = sadd.s32 %s95, 1
      %s97 = scalar_select %p94, %s95, %s96
      %p100 = pneg %p94
      %p101 = scmp.eq.s32.totalorder %s17, 1
      %p102 = por %p100, %p101
      %p103 = scmp.ne.s32.totalorder %s95, %s98
      %p104 = scmp.eq.s32.totalorder %s17, 0
      %p105 = por %p103, %p104
      %p106 = scmp.ne.s32.totalorder %s95, %s98
      %p107 = scmp.eq.s32.totalorder %s22, 1
      %p108 = por %p106, %p107
      %p109 = scmp.ne.s32.totalorder %s98, %s99
      %p110 = scmp.eq.s32.totalorder %s22, 0
      %p111 = por %p109, %p110
      %p112 = scmp.ne.s32.totalorder %s98, %s99
      %p113 = scmp.eq.s32.totalorder %s23, 1
      %p114 = por %p112, %p113
      %p116 = scmp.ne.s32.totalorder %s99, %s115
      %p117 = scmp.eq.s32.totalorder %s23, 0
      %p118 = por %p116, %p117
      %s119 = ssub.s32 %s24, %s36
      %p120 = scmp.eq.s32.totalorder %s119, 0
      %s122 = sadd.s32 %s121, 1
      %s123 = scalar_select %p120, %s121, %s122
      %p126 = pneg %p120
      %p127 = scmp.eq.s32.totalorder %s17, 1
      %p128 = por %p126, %p127
      %p129 = scmp.ne.s32.totalorder %s121, %s124
      %p130 = scmp.eq.s32.totalorder %s17, 0
      %p131 = por %p129, %p130
      %p132 = scmp.ne.s32.totalorder %s121, %s124
      %p133 = scmp.eq.s32.totalorder %s22, 1
      %p134 = por %p132, %p133
      %p135 = scmp.ne.s32.totalorder %s124, %s125
      %p136 = scmp.eq.s32.totalorder %s22, 0
      %p137 = por %p135, %p136
      %p138 = scmp.ne.s32.totalorder %s124, %s125
      %p139 = scmp.eq.s32.totalorder %s23, 1
      %p140 = por %p138, %p139
      %p142 = scmp.ne.s32.totalorder %s125, %s141
      %p143 = scmp.eq.s32.totalorder %s23, 0
      %p144 = por %p142, %p143
      %s145 = ssub.s32 %s24, %s36
      %p146 = scmp.eq.s32.totalorder %s145, 0
      %s148 = sadd.s32 %s147, 1
      %s149 = scalar_select %p146, %s147, %s148
      %p152 = pneg %p146
      %p153 = scmp.eq.s32.totalorder %s17, 1
      %p154 = por %p152, %p153
      %p155 = scmp.ne.s32.totalorder %s147, %s150
      %p156 = scmp.eq.s32.totalorder %s17, 0
      %p157 = por %p155, %p156
      %p158 = scmp.ne.s32.totalorder %s147, %s150
      %p159 = scmp.eq.s32.totalorder %s22, 1
      %p160 = por %p158, %p159
      %p161 = scmp.ne.s32.totalorder %s150, %s151
      %p162 = scmp.eq.s32.totalorder %s22, 0
      %p163 = por %p161, %p162
      %p164 = scmp.ne.s32.totalorder %s150, %s151
      %p165 = scmp.eq.s32.totalorder %s23, 1
      %p166 = por %p164, %p165
      %p168 = scmp.ne.s32.totalorder %s151, %s167
      %p169 = scmp.eq.s32.totalorder %s23, 0
      %p170 = por %p168, %p169
      %p171 = scmp.le.s32.totalorder 1, %s17
      %p172 = scmp.lt.s32.totalorder %s17, 3
      %p173 = pnand %p171, %p172
      %p174 = pneg %p173
      // Predicated region
      $region9: #{tpu_custom_call.1} parent=5 // pred_check
        _
      $region10: #{tpu_custom_call.1} parent=5 // pred_check_branch
        %176 = sbr.rel (%p173) target = $region12
      $region11: #{tpu_custom_call.1} parent=5 // pred_region
        %s177 = ssub.s32 %s17, 1
      $region12: #{tpu_custom_call.1} parent=5 // pred_fallthru
        _
      %p178 = scmp.lt.s32.totalorder %s17, 2
      // Predicated region
      $region13: #{tpu_custom_call.1} parent=5 // pred_check
        %p179 = pneg %p178
      $region14: #{tpu_custom_call.1} parent=5 // pred_check_branch
        %181 = sbr.rel (%p179) target = $region16
      $region15: #{tpu_custom_call.1} parent=5 // pred_region
        // Predicated region
        $region17: #{tpu_custom_call.1} parent=15 // pred_check
          %p182 = pneg %p51
        $region18: #{tpu_custom_call.1} parent=15 // pred_check_branch
          %184 = sbr.rel (%p182) target = $region20
        $region19: #{tpu_custom_call.1} parent=15 // pred_region
          %s185 = sand.u32 %s41, 1
          %s186 = scalar_lea.sflag [#allocation6], %s185
          %s187 = sand.u32 %s41, 1
          %s188 = smul.addr %s187, 32
          %s189 = scalar_lea.vmem [#allocation5], %s188
          %191 = vsyncadd %s186, 0
          %s192 = smul.addr %s24, 4
          %s193 = sadd.s32 %s25, %s192
          %s194 = smul.addr %s193, 8
          %s195 = scalar_lea.hbm %s0, %s194
          %s196 = sshll.u32 %s195, 4
          %s197 = int_to_ptr.hbm [resolvable:$true] %s196
          %s198 = sshll.u32 %s189, 4
          %s199 = int_to_ptr.vmem [resolvable:$true] %s198
          %204 = dma.hbm_to_vmem [thread:$0]  %s197, 512, %s199, %s186, 128, 128, 8
        $region20: #{tpu_custom_call.1} parent=15 // pred_fallthru
          _
        // Predicated region
        $region21: #{tpu_custom_call.1} parent=15 // pred_check
          %p205 = pneg %p79
        $region22: #{tpu_custom_call.1} parent=15 // pred_check_branch
          %207 = sbr.rel (%p205) target = $region24
        $region23: #{tpu_custom_call.1} parent=15 // pred_region
          %s208 = sand.u32 %s69, 1
          %s209 = scalar_lea.sflag [#allocation8], %s208
          %s210 = sand.u32 %s69, 1
          %s211 = smul.addr %s210, 8
          %s212 = scalar_lea.vmem [#allocation7], %s211
          %214 = vsyncadd %s209, 0
          %s215 = sadd.s32 %s25, %s24
          %s216 = smul.addr %s215, 8
          %s217 = scalar_lea.hbm %s1, %s216
          %s219 = sshll.u32 %s217, 4
          %s220 = int_to_ptr.hbm [resolvable:$true] %s219
          %s221 = sshll.u32 %s212, 4
          %s222 = int_to_ptr.vmem [resolvable:$true] %s221
          %224 = dma.hbm_to_vmem [thread:$0]  %s220, 128, %s222, %s209
        $region24: #{tpu_custom_call.1} parent=15 // pred_fallthru
          _
      $region16: #{tpu_custom_call.1} parent=5 // pred_fallthru
        _
      %p225 = scmp.le.s32.totalorder 1, %s17
      %p226 = scmp.lt.s32.totalorder %s17, 3
      %p227 = pnand %p225, %p226
      %p228 = pneg %p227
      // Predicated region
      $region25: #{tpu_custom_call.1} parent=5 // pred_check
        _
      $region26: #{tpu_custom_call.1} parent=5 // pred_check_branch
        %230 = sbr.rel (%p227) target = $region28
      $region27: #{tpu_custom_call.1} parent=5 // pred_region
        %s231 = ssub.s32 %s17, 1
        %s232 = sand.u32 %s44, 1
        %s233 = scalar_lea.sflag [#allocation6], %s232
        %s234 = sand.u32 %s44, 1
        %s235 = smul.addr %s234, 32
        %s236 = scalar_lea.vmem [#allocation5], %s235
        // Predicated region
        $region29: #{tpu_custom_call.1} parent=27 // pred_check
          %p237 = pneg %p57
        $region30: #{tpu_custom_call.1} parent=27 // pred_check_branch
          %239 = sbr.rel (%p237) target = $region32
        $region31: #{tpu_custom_call.1} parent=27 // pred_region
          %241 = dma.done %s233, 512
        $region32: #{tpu_custom_call.1} parent=27 // pred_fallthru
          _
        %s242 = sand.u32 %s72, 1
        %s243 = scalar_lea.sflag [#allocation8], %s242
        %s244 = sand.u32 %s72, 1
        %s245 = smul.addr %s244, 8
        %s246 = scalar_lea.vmem [#allocation7], %s245
        // Predicated region
        $region33: #{tpu_custom_call.1} parent=27 // pred_check
          %p247 = pneg %p85
        $region34: #{tpu_custom_call.1} parent=27 // pred_check_branch
          %249 = sbr.rel (%p247) target = $region36
        $region35: #{tpu_custom_call.1} parent=27 // pred_region
          %251 = dma.done %s243, 128
        $region36: #{tpu_custom_call.1} parent=27 // pred_fallthru
          _
        %s252 = sand.u32 %s44, 1
        %s253 = scalar_lea.sflag [#allocation6], %s252
        %s254 = sand.u32 %s44, 1
        %s255 = smul.addr %s254, 32
        %s256 = scalar_lea.vmem [#allocation5], %s255
        %p257 = pneg %p57
        %p258 = pneg %p54
        %s259 = sand.u32 %s72, 1
        %s260 = scalar_lea.sflag [#allocation8], %s259
        %s261 = sand.u32 %s72, 1
        %s262 = smul.addr %s261, 8
        %s263 = scalar_lea.vmem [#allocation7], %s262
        %p264 = pneg %p85
        %p265 = pneg %p82
        %p266 = pneg %p111
        %p267 = pneg %p108
        %p268 = scmp.lt.s32.totalorder %s26, 1
        %s269 = scalar_select %p268, %s26, 1
        %s270 = scalar_lea.vmem %s2, %s269
        %p271 = pneg %p137
        %p272 = pneg %p134
        %p273 = scmp.lt.s32.totalorder %s26, 1
        %s274 = scalar_select %p273, %s26, 1
        %s275 = scalar_lea.vmem %s3, %s274
        %p276 = pneg %p163
        %p277 = pneg %p160
        %p278 = scmp.lt.s32.totalorder %s26, 1
        %s279 = scalar_select %p278, %s26, 1
        %s280 = scalar_lea.vmem %s4, %s279
        %p281 = scmp.lt.s32.totalorder %s26, 1
        %s282 = scalar_select %p281, %s26, 1
        %s283 = scalar_lea.vmem %s2, %s282
        %p284 = scmp.lt.s32.totalorder %s26, 1
        %s285 = scalar_select %p284, %s26, 1
        %s286 = scalar_lea.vmem %s3, %s285
        %p287 = scmp.lt.s32.totalorder %s26, 1
        %s288 = scalar_select %p287, %s26, 1
        %s289 = scalar_lea.vmem %s4, %s288
        %p290 = scmp.eq.s32.totalorder %s27, 0
        // Predicated region
        $region37: #{tpu_custom_call.1} parent=27 // pred_check
          %p291 = pneg %p290
        $region38: #{tpu_custom_call.1} parent=27 // pred_check_branch
          %293 = sbr.rel (%p291) target = $region40
        $region39: #{tpu_custom_call.1} parent=27 // pred_region
          %294 = vst [vmem:[#allocation2] sm:$0xff] 0.0
          %295 = vst [vmem:[#allocation3] sm:$0xff] 0.0
          %296 = vst [vmem:[#allocation4] sm:$0xff] 0.0
        $region40: #{tpu_custom_call.1} parent=27 // pred_fallthru
          _
        %v297 = vld [vmem:[%s236] sm:$0xff]
        %v298 = vld [vmem:[%s236 + $0x8] sm:$0xff]
        %v299 = vld [vmem:[%s236 + $0x10] sm:$0xff]
        %v300 = vld [vmem:[%s236 + $0x18] sm:$0xff]
        %v301 = vld [vmem:[%s246] sm:$0xff]
        %v302 = vmax.f32 %v297, %v298
        %v303 = vmax.f32 %v302, %v299
        %v304 = vmax.f32 %v303, %v300
        %v305 = vsub.f32 %v297, %v304
        %v306 = vmul.f32 %v305, 1.442695
        %v307 = vpow.pop %v306
        %v308 = vsub.f32 %v298, %v304
        %v309 = vmul.f32 %v308, 1.442695
        %v310 = vpow.pop %v309
        %v311 = vsub.f32 %v299, %v304
        %v312 = vmul.f32 %v311, 1.442695
        %v313 = vpow.pop %v312
        %v314 = vsub.f32 %v300, %v304
        %v315 = vmul.f32 %v314, 1.442695
        %v316 = vpow.pop %v315
        %v317 = vadd.f32 %v307, %v310
        %v318 = vadd.f32 %v317, %v313
        %v319 = vadd.f32 %v318, %v316
        %v320 = vrcp.pop %v319
        %v321 = vmul.f32 %v319, %v320
        %v322 = vsub.f32 1.0, %v321
        %v323 = vmul.f32 %v320, %v322
        %v324 = vadd.f32 %v320, %v323
        %vm325 = vweird.f32 %v319
        %vm326 = vweird.f32 %v320
        %vm327 = vmor %vm325, %vm326
        %v328 = vsel %vm327, %v320, %v324
        %v329 = vand.u32 2147483647, %v319
        %vm330 = vcmp.eq.f32.partialorder %v329, 8.507059e+37
        %v331 = vand.u32 %v319, 2147483648
        %v332 = vor.u32 1.1754944e-38, %v331
        %v333 = vsel %vm330, %v332, %v328
        %v334 = vmul.f32 %v310, %v333
        %v335 = vmul.f32 %v313, %v333
        %v336 = vmul.f32 %v316, %v333
        %vm337 = vcmp.eq.s32.totalorder %v301, 1
        %v338 = vsel %vm337, %v334, 0.0
        %v339 = vadd.f32 %v334, %v335
        %vm340 = vcmp.eq.s32.totalorder %v301, 2
        %v341 = vsel %vm340, %v335, 0.0
        %v342 = vadd.f32 %v338, %v341
        %v343 = vadd.f32 %v339, %v336
        %vm344 = vcmp.eq.s32.totalorder %v301, 3
        %v345 = vsel %vm344, %v336, 0.0
        %v346 = vadd.f32 %v342, %v345
        %vm347 = vcmp.ne.s32.totalorder %v301, 0
        %v348 = vsel %vm347, 1, 0
        %v349 = vcvt.s32.f32 %v348
        %v350 = vlaneseq
        %v351 = vshrl.u32 %v350, 7
        %v352 = vlaneseq
        %v353 = vand.u32 %v352, 127
        %s354 = smul.u32 %s27, 8
        %v355 = vstv %s354
        %v356 = vadd.s32 %v355, %v351
        %v357 = vmul.u32 %v356, 128
        %v358 = vadd.s32 %v357, %v353
        %vm359 = vcmp.lt.s32.totalorder %v358, 256
        %v360 = vsel %vm359, 1, 0
        %v361 = vcvt.s32.f32 %v360
        %v362 = vmul.f32 %v343, %v361
        %v363 = vmul.f32 %v346, %v361
        %v364 = vmul.f32 %v349, %v361
        %v365 = vld [vmem:[#allocation2] sm:$0xff]
        %v366 = vadd.f32 %v365, %v363
        %367 = vst [vmem:[#allocation2] sm:$0xff] %v366
        %v368 = vld [vmem:[#allocation3] sm:$0xff]
        %v369 = vadd.f32 %v368, %v362
        %370 = vst [vmem:[#allocation3] sm:$0xff] %v369
        %v371 = vld [vmem:[#allocation4] sm:$0xff]
        %v372 = vadd.f32 %v371, %v364
        %373 = vst [vmem:[#allocation4] sm:$0xff] %v372
        // Predicated region
        $region41: #{tpu_custom_call.1} parent=27 // pred_check
          %p374 = pneg %p290
        $region42: #{tpu_custom_call.1} parent=27 // pred_check_branch
          %376 = sbr.rel (%p374) target = $region44
        $region43: #{tpu_custom_call.1} parent=27 // pred_region
          %v377 = vld [vmem:[#allocation2] sm:$0xff]
          %378 = vadd.xlane.f32.xlu0 %v377
          %v379 = vpop.xlane.xlu0 %378
          %v380 = vrot.slane %v379, 4
          %v381 = vadd.f32 %v379, %v380
          %v382 = vrot.slane %v381, 2
          %v383 = vadd.f32 %v381, %v382
          %v384 = vrot.slane %v383, 1
          %v385 = vadd.f32 %v383, %v384
          %s386 = vtos %v385
          %v387 = vstv %s386
          %vm388 = vcmask 0
          %389 = vst.msk [vmem:[%s283] sm:$0x1] %vm388, %v387
          %v390 = vld [vmem:[#allocation3] sm:$0xff]
          %391 = vadd.xlane.f32.xlu0 %v390
          %v392 = vpop.xlane.xlu0 %391
          %v393 = vrot.slane %v392, 4
          %v394 = vadd.f32 %v392, %v393
          %v395 = vrot.slane %v394, 2
          %v396 = vadd.f32 %v394, %v395
          %v397 = vrot.slane %v396, 1
          %v398 = vadd.f32 %v396, %v397
          %s399 = vtos %v398
          %v400 = vstv %s399
          %401 = vst.msk [vmem:[%s286] sm:$0x1] %vm388, %v400
          %v402 = vld [vmem:[#allocation4] sm:$0xff]
          %403 = vadd.xlane.f32.xlu0 %v402
          %v404 = vpop.xlane.xlu0 %403
          %v405 = vrot.slane %v404, 4
          %v406 = vadd.f32 %v404, %v405
          %v407 = vrot.slane %v406, 2
          %v408 = vadd.f32 %v406, %v407
          %v409 = vrot.slane %v408, 1
          %v410 = vadd.f32 %v408, %v409
          %s411 = vtos %v410
          %v412 = vstv %s411
          %413 = vst.msk [vmem:[%s289] sm:$0x1] %vm388, %v412
        $region44: #{tpu_custom_call.1} parent=27 // pred_fallthru
          _
        %p414 = scmp.lt.s32.totalorder %s26, 1
        %s415 = scalar_select %p414, %s26, 1
        %s416 = scalar_lea.vmem %s2, %s415
        %p417 = scmp.lt.s32.totalorder %s26, 1
        %s418 = scalar_select %p417, %s26, 1
        %s419 = scalar_lea.vmem %s3, %s418
        %p420 = scmp.lt.s32.totalorder %s26, 1
        %s421 = scalar_select %p420, %s26, 1
        %s422 = scalar_lea.vmem %s4, %s421
        // Predicated region
        $region45: #{tpu_custom_call.1} parent=27 // pred_check
          %p423 = pneg %p108
        $region46: #{tpu_custom_call.1} parent=27 // pred_check_branch
          %425 = sbr.rel (%p423) target = $region48
        $region47: #{tpu_custom_call.1} parent=27 // pred_region
          _
        $region48: #{tpu_custom_call.1} parent=27 // pred_fallthru
          _
        // Predicated region
        $region49: #{tpu_custom_call.1} parent=27 // pred_check
          %p426 = pneg %p134
        $region50: #{tpu_custom_call.1} parent=27 // pred_check_branch
          %428 = sbr.rel (%p426) target = $region52
        $region51: #{tpu_custom_call.1} parent=27 // pred_region
          _
        $region52: #{tpu_custom_call.1} parent=27 // pred_fallthru
          _
        // Predicated region
        $region53: #{tpu_custom_call.1} parent=27 // pred_check
          %p429 = pneg %p160
        $region54: #{tpu_custom_call.1} parent=27 // pred_check_branch
          %431 = sbr.rel (%p429) target = $region56
        $region55: #{tpu_custom_call.1} parent=27 // pred_region
          _
        $region56: #{tpu_custom_call.1} parent=27 // pred_fallthru
          _
      $region28: #{tpu_custom_call.1} parent=5 // pred_fallthru
        _
      %p432 = scmp.le.s32.totalorder 2, %s17
      // Predicated region
      $region57: #{tpu_custom_call.1} parent=5 // pred_check
        %p433 = pneg %p432
      $region58: #{tpu_custom_call.1} parent=5 // pred_check_branch
        %435 = sbr.rel (%p433) target = $region60
      $region59: #{tpu_custom_call.1} parent=5 // pred_region
        %s436 = ssub.s32 %s17, 2
        // Predicated region
        $region61: #{tpu_custom_call.1} parent=59 // pred_check
          %p437 = pneg %p114
        $region62: #{tpu_custom_call.1} parent=59 // pred_check_branch
          %439 = sbr.rel (%p437) target = $region64
        $region63: #{tpu_custom_call.1} parent=59 // pred_region
          %p440 = scmp.lt.s32.totalorder %s28, 1
          %s441 = scalar_select %p440, %s28, 1
          %s442 = scalar_lea.vmem %s2, %s441
        $region64: #{tpu_custom_call.1} parent=59 // pred_fallthru
          _
        // Predicated region
        $region65: #{tpu_custom_call.1} parent=59 // pred_check
          %p443 = pneg %p140
        $region66: #{tpu_custom_call.1} parent=59 // pred_check_branch
          %445 = sbr.rel (%p443) target = $region68
        $region67: #{tpu_custom_call.1} parent=59 // pred_region
          %p446 = scmp.lt.s32.totalorder %s28, 1
          %s447 = scalar_select %p446, %s28, 1
          %s448 = scalar_lea.vmem %s3, %s447
        $region68: #{tpu_custom_call.1} parent=59 // pred_fallthru
          _
        // Predicated region
        $region69: #{tpu_custom_call.1} parent=59 // pred_check
          %p449 = pneg %p166
        $region70: #{tpu_custom_call.1} parent=59 // pred_check_branch
          %451 = sbr.rel (%p449) target = $region72
        $region71: #{tpu_custom_call.1} parent=59 // pred_region
          %p452 = scmp.lt.s32.totalorder %s28, 1
          %s453 = scalar_select %p452, %s28, 1
          %s454 = scalar_lea.vmem %s4, %s453
        $region72: #{tpu_custom_call.1} parent=59 // pred_fallthru
          _
      $region60: #{tpu_custom_call.1} parent=5 // pred_fallthru
        _
    $region6: #{tpu_custom_call.1} parent=1 // loop_footer
      %s21 = sadd.s32 1, %s17
    $region7: #{tpu_custom_call.1} parent=1 // loop_footer_branch
      %16 = sbr.rel target = $region3
    $region8: #{tpu_custom_call.1} parent=1 // loop_exit
      _
    %455 = vsyncpa [#allocation6], 1
    %s456 = scalar_lea.sflag [#allocation6], 1
    %457 = vsyncpa %s456, 1
    %458 = vsyncpa [#allocation8], 1
    %s459 = scalar_lea.sflag [#allocation8], 1
    %460 = vsyncpa %s459, 1

</llo_original>
